<compile_context>
chip_gen: v5e
topology: v5e:2x2
jax: 0.10.0
libtpu: 0.0.40
codegen_flags: <defaults>
</compile_context>

<pallas_src>
import functools
import math

import jax
import jax.numpy as jnp
from jax.experimental import pallas as pl
from jax.experimental.pallas import tpu as pltpu

SPLIT_TENSOR_NODES = 32          # args.split_tensor_nodes (synthetic)
H1, H2, H3 = 64, 32, 16
PACK = 8                         # batch rows packed per lane-dense row (16*8 = 128 out lanes)


def _round_up(x, m):
    return ((x + m - 1) // m) * m


def _is_v5e():
    try:
        kind = jax.devices()[0].device_kind.lower()
    except Exception:
        return False
    return ("v5e" in kind) or ("v5 lite" in kind) or ("v5lite" in kind)


def mlp_kernel(x_ref, w1_ref, b1_ref, w2_ref, b2_ref, w3_ref, b3_ref, o_ref,
               *, split_l12):
    # Packed-space MLP: x tile is (tp, PACK*32) f32, weights are block-diagonal (PACK
    # independent copies), so this is numerically identical to the per-row MLP.
    x = x_ref[...].astype(jnp.bfloat16)            # in-kernel cast, hidden under the DMA
    if split_l12:
        # v5e (128x128 MXU): skip the all-zero 128-wide off-diagonal weight tiles of
        # layers 1-2 by running two independent half-dots per layer.
        kh = PACK * SPLIT_TENSOR_NODES // 2        # 128
        n1h = PACK * H1 // 2                       # 256
        n2h = PACK * H2 // 2                       # 128
        x_lo, x_hi = x[:, :kh], x[:, kh:]
        h1_lo = jnp.dot(x_lo, w1_ref[:kh, :n1h],
                        preferred_element_type=jnp.float32) + b1_ref[:, :n1h]
        h1_hi = jnp.dot(x_hi, w1_ref[kh:, n1h:],
                        preferred_element_type=jnp.float32) + b1_ref[:, n1h:]
        h1_lo = jnp.maximum(h1_lo, 0.0).astype(jnp.bfloat16)
        h1_hi = jnp.maximum(h1_hi, 0.0).astype(jnp.bfloat16)
        h2_lo = jnp.dot(h1_lo, w2_ref[:n1h, :n2h],
                        preferred_element_type=jnp.float32) + b2_ref[:, :n2h]
        h2_hi = jnp.dot(h1_hi, w2_ref[n1h:, n2h:],
                        preferred_element_type=jnp.float32) + b2_ref[:, n2h:]
        h2 = jnp.concatenate(
            [jnp.maximum(h2_lo, 0.0), jnp.maximum(h2_hi, 0.0)], axis=-1)
    else:
        h1 = jnp.dot(x, w1_ref[...], preferred_element_type=jnp.float32) + b1_ref[...]
        h1 = jnp.maximum(h1, 0.0)                                          # relu (f32)
        h2 = jnp.dot(h1.astype(jnp.bfloat16), w2_ref[...],
                     preferred_element_type=jnp.float32) + b2_ref[...]
        h2 = jnp.maximum(h2, 0.0)                                          # relu (f32)
    h3 = jnp.dot(h2.astype(jnp.bfloat16), w3_ref[...],
                 preferred_element_type=jnp.float32) + b3_ref[...]
    o_ref[...] = h3.astype(o_ref.dtype)            # lane-dense 128-wide store


def pack_params(params):
    """Block-diagonal bf16 weights (PACK independent copies) + tiled f32 biases.

    Call ONCE per parameter set (hoisted out of the per-forward hot path)."""
    w1, b1, w2, b2, w3, b3 = params
    eye = jnp.eye(PACK, dtype=jnp.float32)
    w1b = jnp.kron(eye, w1).astype(jnp.bfloat16)       # (256, 512)
    w2b = jnp.kron(eye, w2).astype(jnp.bfloat16)       # (512, 256)
    w3b = jnp.kron(eye, w3).astype(jnp.bfloat16)       # (256, 128)
    b1b = jnp.tile(b1, (1, PACK)).astype(jnp.float32)  # (1, 512)
    b2b = jnp.tile(b2, (1, PACK)).astype(jnp.float32)  # (1, 256)
    b3b = jnp.tile(b3, (1, PACK)).astype(jnp.float32)  # (1, 128)
    return w1b, b1b, w2b, b2b, w3b, b3b


def server_network_forward(x, packed_params, *, block_rows=32768,
                           out_dtype=jnp.float32, split_zero_blocks=None):
    """y = linear3(relu(linear2(relu(linear1(x))))), x: (B, 32) f32 -> (B, 16)."""
    B, F = x.shape
    assert F == SPLIT_TENSOR_NODES
    w1b, b1b, w2b, b2b, w3b, b3b = packed_params
    if split_zero_blocks is None:
        split_zero_blocks = _is_v5e()               # only pays off on v5e's 128x128 MXU

    # Tiling in packed-row space: tp packed rows per grid step (multiple of 8).
    bp = -(-B // PACK)                              # packed rows needed to cover B
    tp_target = max(8, block_rows // PACK)
    n_tiles = max(1, pl.cdiv(bp, tp_target))
    if bp >= 16 and n_tiles % 2:                    # >=2 even steps -> v7x megacore balance
        n_tiles += 1
    tp = _round_up(-(-bp // n_tiles), 8)            # packed rows per tile
    bp_pad = n_tiles * tp
    b_pad = bp_pad * PACK

    if b_pad != B:
        # TODO(synk): for large ragged batches, run the tail through a second small call
        # instead of re-materializing the whole (padded) x array here.
        x = jnp.pad(x, ((0, b_pad - B), (0, 0)))
    xp = x.reshape(bp_pad, PACK * F)                # free row-major reshape, stays f32

    def const_spec(arr):
        return pl.BlockSpec(arr.shape, lambda i: (0, 0))   # weights resident in VMEM

    flops = 2 * bp_pad * (w1b.shape[0] * w1b.shape[1]
                          + w2b.shape[0] * w2b.shape[1]
                          + w3b.shape[0] * w3b.shape[1])
    bytes_accessed = (xp.size * 4
                      + (w1b.size + w2b.size + w3b.size) * 2
                      + (b1b.size + b2b.size + b3b.size) * 4
                      + bp_pad * PACK * H3 * jnp.dtype(out_dtype).itemsize)

    kernel = functools.partial(mlp_kernel, split_l12=bool(split_zero_blocks))

    out_packed = pl.pallas_call(
        kernel,
        out_shape=jax.ShapeDtypeStruct((bp_pad, PACK * H3), out_dtype),
        grid=(n_tiles,),
        in_specs=[
            pl.BlockSpec((tp, PACK * F), lambda i: (i, 0)),   # streamed f32 x tiles
            const_spec(w1b), const_spec(b1b),
            const_spec(w2b), const_spec(b2b),
            const_spec(w3b), const_spec(b3b),
        ],
        out_specs=pl.BlockSpec((tp, PACK * H3), lambda i: (i, 0)),  # lane-dense (128)
        compiler_params=pltpu.CompilerParams(
            dimension_semantics=("parallel",),     # megacore sharding on v7x
            vmem_limit_bytes=32 * 1024 * 1024,     # safe on v5e/v6e/v7x; tiles sized to fit
        ),
        cost_estimate=pl.CostEstimate(flops=flops, transcendentals=0,
                                      bytes_accessed=bytes_accessed),
    )(xp, w1b, b1b, w2b, b2b, w3b, b3b)

    # Free reshape back to (B, 16), drop padding rows.
    return out_packed.reshape(b_pad, H3)[:B]


def init_params(key):
    # nn.Linear default init: U(-1/sqrt(fan_in), 1/sqrt(fan_in)); stored as [in, out].
    def linear(key, fan_in, fan_out):
        kw, kb = jax.random.split(key)
        bound = 1.0 / math.sqrt(fan_in)
        w = jax.random.uniform(kw, (fan_in, fan_out), jnp.float32, -bound, bound)
        b = jax.random.uniform(kb, (1, fan_out), jnp.float32, -bound, bound)
        return w, b

    k1, k2, k3 = jax.random.split(key, 3)
    w1, b1 = linear(k1, SPLIT_TENSOR_NODES, H1)
    w2, b2 = linear(k2, H1, H2)
    w3, b3 = linear(k3, H2, H3)
    return (w1, b1, w2, b2, w3, b3)


def reference_forward(x, params):
    # Pure-JAX reference mirroring the kernel's mixed precision (bf16 operands, f32 math).
    w1, b1, w2, b2, w3, b3 = params
    bf = lambda a: a.astype(jnp.bfloat16).astype(jnp.float32)
    hp = jax.lax.Precision.HIGHEST
    h = jnp.maximum(jnp.dot(bf(x), bf(w1), precision=hp) + b1, 0.0)
    h = jnp.maximum(jnp.dot(bf(h), bf(w2), precision=hp) + b2, 0.0)
    return jnp.dot(bf(h), bf(w3), precision=hp) + b3


if __name__ == "__main__":
    key = jax.random.PRNGKey(0)
    kx, kp = jax.random.split(key)
    B = 250  # deliberately not a multiple of 8/64 to exercise the padding path
    x = jax.random.normal(kx, (B, SPLIT_TENSOR_NODES), jnp.float32)
    params = init_params(kp)
    packed = pack_params(params)   # hoisted: block-diagonal weights built once, reused

    out = jax.block_until_ready(server_network_forward(x, packed))
    ref = reference_forward(x, params)

    assert out.shape == (B, H3), out.shape
    err = float(jnp.max(jnp.abs(out - ref)))
    assert jnp.allclose(out, ref, atol=1e-3, rtol=1e-3), f"mismatch vs reference (max abs err {err})"
    print("KERNEL_OK")
</pallas_src>

<mosaic_0001>
module attributes {stable_mosaic.version = 11 : i64} {
  func.func @mlp_kernel(%arg0: i32, %arg1: memref<16x256xf32, #tpu.memory_space<vmem>>, %arg2: memref<256x512xbf16, #tpu.memory_space<vmem>>, %arg3: memref<1x512xf32, #tpu.memory_space<vmem>>, %arg4: memref<512x256xbf16, #tpu.memory_space<vmem>>, %arg5: memref<1x256xf32, #tpu.memory_space<vmem>>, %arg6: memref<256x128xbf16, #tpu.memory_space<vmem>>, %arg7: memref<1x128xf32, #tpu.memory_space<vmem>>, %arg8: memref<16x128xf32, #tpu.memory_space<vmem>>) attributes {dimension_semantics = [#tpu.dimension_semantics<parallel>], iteration_bounds = array<i64: 2>, scalar_prefetch = 0 : i64, scratch_operands = 0 : i64, tpu.core_type = #tpu.core_type<tc>, window_params = [{transform_indices = @transform_0, window_bounds = array<i64: 16, 256>}, {pipeline_mode = #tpu.pipeline_mode<synchronous>, transform_indices = @transform_1, window_bounds = array<i64: 256, 512>}, {pipeline_mode = #tpu.pipeline_mode<synchronous>, transform_indices = @transform_2, window_bounds = array<i64: 1, 512>}, {pipeline_mode = #tpu.pipeline_mode<synchronous>, transform_indices = @transform_3, window_bounds = array<i64: 512, 256>}, {pipeline_mode = #tpu.pipeline_mode<synchronous>, transform_indices = @transform_4, window_bounds = array<i64: 1, 256>}, {pipeline_mode = #tpu.pipeline_mode<synchronous>, transform_indices = @transform_5, window_bounds = array<i64: 256, 128>}, {pipeline_mode = #tpu.pipeline_mode<synchronous>, transform_indices = @transform_6, window_bounds = array<i64: 1, 128>}, {transform_indices = @transform_7, window_bounds = array<i64: 16, 128>}]} {
    %c0 = arith.constant 0 : index
    %c0_0 = arith.constant 0 : index
    %0 = vector.load %arg1[%c0, %c0_0] : memref<16x256xf32, #tpu.memory_space<vmem>>, vector<16x256xf32>
    %1 = arith.truncf %0 : vector<16x256xf32> to vector<16x256xbf16>
    %c0_1 = arith.constant 0 : index
    %c0_2 = arith.constant 0 : index
    %2 = vector.load %arg2[%c0_1, %c0_2] : memref<256x512xbf16, #tpu.memory_space<vmem>>, vector<256x512xbf16>
    %cst = arith.constant dense<0.000000e+00> : vector<16x512xf32>
    %3 = tpu.matmul %1, %2, %cst {dimension_numbers = #tpu.dot_dimension_numbers<[1], [0], [0], [1], [0, 0, 1, 1], [], []>} : vector<16x256xbf16>, vector<256x512xbf16>, vector<16x512xf32> -> vector<16x512xf32>
    %c0_3 = arith.constant 0 : index
    %c0_4 = arith.constant 0 : index
    %4 = vector.load %arg3[%c0_3, %c0_4] : memref<1x512xf32, #tpu.memory_space<vmem>>, vector<1x512xf32>
    %5 = vector.broadcast %4 : vector<1x512xf32> to vector<16x512xf32>
    %6 = arith.addf %3, %5 : vector<16x512xf32>
    %cst_5 = arith.constant 0.000000e+00 : f32
    %7 = vector.broadcast %cst_5 : f32 to vector<16x512xf32>
    %8 = arith.maximumf %6, %7 : vector<16x512xf32>
    %9 = arith.truncf %8 : vector<16x512xf32> to vector<16x512xbf16>
    %c0_6 = arith.constant 0 : index
    %c0_7 = arith.constant 0 : index
    %10 = vector.load %arg4[%c0_6, %c0_7] : memref<512x256xbf16, #tpu.memory_space<vmem>>, vector<512x256xbf16>
    %cst_8 = arith.constant dense<0.000000e+00> : vector<16x256xf32>
    %11 = tpu.matmul %9, %10, %cst_8 {dimension_numbers = #tpu.dot_dimension_numbers<[1], [0], [0], [1], [0, 0, 1, 1], [], []>} : vector<16x512xbf16>, vector<512x256xbf16>, vector<16x256xf32> -> vector<16x256xf32>
    %c0_9 = arith.constant 0 : index
    %c0_10 = arith.constant 0 : index
    %12 = vector.load %arg5[%c0_9, %c0_10] : memref<1x256xf32, #tpu.memory_space<vmem>>, vector<1x256xf32>
    %13 = vector.broadcast %12 : vector<1x256xf32> to vector<16x256xf32>
    %14 = arith.addf %11, %13 : vector<16x256xf32>
    %cst_11 = arith.constant 0.000000e+00 : f32
    %15 = vector.broadcast %cst_11 : f32 to vector<16x256xf32>
    %16 = arith.maximumf %14, %15 : vector<16x256xf32>
    %17 = arith.truncf %16 : vector<16x256xf32> to vector<16x256xbf16>
    %c0_12 = arith.constant 0 : index
    %c0_13 = arith.constant 0 : index
    %18 = vector.load %arg6[%c0_12, %c0_13] : memref<256x128xbf16, #tpu.memory_space<vmem>>, vector<256x128xbf16>
    %cst_14 = arith.constant dense<0.000000e+00> : vector<16x128xf32>
    %19 = tpu.matmul %17, %18, %cst_14 {dimension_numbers = #tpu.dot_dimension_numbers<[1], [0], [0], [1], [0, 0, 1, 1], [], []>} : vector<16x256xbf16>, vector<256x128xbf16>, vector<16x128xf32> -> vector<16x128xf32>
    %c0_15 = arith.constant 0 : index
    %c0_16 = arith.constant 0 : index
    %20 = vector.load %arg7[%c0_15, %c0_16] : memref<1x128xf32, #tpu.memory_space<vmem>>, vector<1x128xf32>
    %21 = vector.broadcast %20 : vector<1x128xf32> to vector<16x128xf32>
    %22 = arith.addf %19, %21 : vector<16x128xf32>
    %c0_17 = arith.constant 0 : index
    %c0_18 = arith.constant 0 : index
    %23 = vector.load %arg8[%c0_17, %c0_18] : memref<16x128xf32, #tpu.memory_space<vmem>>, vector<16x128xf32>
    tpu.vector_store %arg8[%c0_17, %c0_18], %22 {strides = array<i32>} : memref<16x128xf32, #tpu.memory_space<vmem>>, vector<16x128xf32>,
    return
  }
  func.func @transform_0(%arg0: i32) -> (i32, i32) {
    %c0_i32 = arith.constant 0 : i32
    %c0_i32_0 = arith.constant 0 : i32
    return %arg0, %c0_i32 : i32, i32
  }
  func.func @transform_1(%arg0: i32) -> (i32, i32) {
    %c0_i32 = arith.constant 0 : i32
    %c0_i32_0 = arith.constant 0 : i32
    %c0_i32_1 = arith.constant 0 : i32
    return %c0_i32, %c0_i32_0 : i32, i32
  }
  func.func @transform_2(%arg0: i32) -> (i32, i32) {
    %c0_i32 = arith.constant 0 : i32
    %c0_i32_0 = arith.constant 0 : i32
    %c0_i32_1 = arith.constant 0 : i32
    return %c0_i32, %c0_i32_0 : i32, i32
  }
  func.func @transform_3(%arg0: i32) -> (i32, i32) {
    %c0_i32 = arith.constant 0 : i32
    %c0_i32_0 = arith.constant 0 : i32
    %c0_i32_1 = arith.constant 0 : i32
    return %c0_i32, %c0_i32_0 : i32, i32
  }
  func.func @transform_4(%arg0: i32) -> (i32, i32) {
    %c0_i32 = arith.constant 0 : i32
    %c0_i32_0 = arith.constant 0 : i32
    %c0_i32_1 = arith.constant 0 : i32
    return %c0_i32, %c0_i32_0 : i32, i32
  }
  func.func @transform_5(%arg0: i32) -> (i32, i32) {
    %c0_i32 = arith.constant 0 : i32
    %c0_i32_0 = arith.constant 0 : i32
    %c0_i32_1 = arith.constant 0 : i32
    return %c0_i32, %c0_i32_0 : i32, i32
  }
  func.func @transform_6(%arg0: i32) -> (i32, i32) {
    %c0_i32 = arith.constant 0 : i32
    %c0_i32_0 = arith.constant 0 : i32
    %c0_i32_1 = arith.constant 0 : i32
    return %c0_i32, %c0_i32_0 : i32, i32
  }
  func.func @transform_7(%arg0: i32) -> (i32, i32) {
    %c0_i32 = arith.constant 0 : i32
    %c0_i32_0 = arith.constant 0 : i32
    return %arg0, %c0_i32 : i32, i32
  }
}

</mosaic_0001>

<llo_original>
// kernel: tpu_custom_call.1
$region0: #{tpu_custom_call.1}
  #allocation0 [shape = 'u32[]', space=smem, size = 0x4, offset = 0x4, fixed_abs, tag = 'smem constant byte address 0x4 - core index']
  #allocation1 [shape = 'u32[72,128]{1,0:T(1,128)}', space=vmem, size = 0x9000, scoped, tag = 'internal scratch']
  %s0 = inlined_call_operand.hbm [shape: f32[32,256], index: 0, kind: input, shape index: {}]
  %s1 = inlined_call_operand.hbm [shape: bf16[256,512], index: 1, kind: input, shape index: {}]
  %s2 = inlined_call_operand.hbm [shape: f32[1,512], index: 2, kind: input, shape index: {}]
  %s3 = inlined_call_operand.hbm [shape: bf16[512,256], index: 3, kind: input, shape index: {}]
  %s4 = inlined_call_operand.vmem [shape: f32[1,256], index: 4, kind: input, shape index: {}]
  %s5 = inlined_call_operand.hbm [shape: bf16[256,128], index: 5, kind: input, shape index: {}]
  %s6 = inlined_call_operand.vmem [shape: f32[1,128], index: 6, kind: input, shape index: {}]
  %s7 = inlined_call_operand.hbm [shape: f32[32,128], index: 7, kind: output, shape index: {}]
  %s8 = sld [smem:[#allocation0]]
  $region81: #{tpu_custom_call.1} parent=0
    _
  %s10 = ssub.s32 1, %s8
  %s11 = scalar_select 0, %s10, %s8
  $region1: #{tpu_custom_call.1} parent=0
    #allocation2 [shape = 'u8[32768]{0}', space=vmem, size = 0x8000, scoped, tag = 'input window, operand 0']
    #allocation3 [shape = 's32[2]{0}', space=sflag, size = 0x8, scoped, tag = 'scoped memory for tpu_custom_call.1']
    #allocation4 [shape = 's32[2]{0}', space=sflag, size = 0x8, scoped, tag = 'scoped memory for tpu_custom_call.1']
    #allocation5 [shape = 'u8[262144]{0}', space=vmem, size = 0x40000, scoped, tag = 'input window, operand 1, single buffered']
    #allocation6 [shape = 's32[1]{0}', space=sflag, size = 0x4, scoped, tag = 'scoped memory for tpu_custom_call.1']
    #allocation7 [shape = 'u8[2048]{0}', space=vmem, size = 0x800, scoped, tag = 'input window, operand 2, single buffered']
    #allocation8 [shape = 'u8[262144]{0}', space=vmem, size = 0x40000, scoped, tag = 'input window, operand 3, single buffered']
    #allocation9 [shape = 's32[1]{0}', space=sflag, size = 0x4, scoped, tag = 'scoped memory for tpu_custom_call.1']
    #allocation10 [shape = 'u8[65536]{0}', space=vmem, size = 0x10000, scoped, tag = 'input window, operand 5, single buffered']
    #allocation11 [shape = 'u8[16384]{0}', space=vmem, size = 0x4000, scoped, tag = 'output window, operand 0']
    %12 = vsyncpa [#allocation3], 0
    %s13 = scalar_lea.sflag [#allocation3], 1
    %14 = vsyncpa %s13, 0
    %15 = vsyncpa [#allocation6], 0
    %16 = vsyncpa [#allocation9], 0
    %17 = vsyncpa [#allocation4], 0
    %s18 = scalar_lea.sflag [#allocation4], 1
    %19 = vsyncpa %s18, 0
    loop: start=0, step=1, limit=4
    $region2: #{tpu_custom_call.1} parent=1 // loop_pre_header
      _
    $region3: #{tpu_custom_call.1} parent=1 // loop_header
      %s21 = sphi 0, %s25
      %p22 = scmp.ge.s32.totalorder %s21, 4
      %s31 = sphi 0, %s33
      %s34 = sphi 0, %s31
      %s35 = sphi 0, %s34
      %s51 = sphi 0, %s35
      %s55 = sphi 0, %s55
      %s57 = sphi 0, %s55
      %s58 = sphi 0, %s57
      %s72 = sphi 0, %s58
      %s76 = sphi 0, %s76
      %s78 = sphi 0, %s76
      %s79 = sphi 0, %s78
      %s93 = sphi 0, %s79
      %s97 = sphi 0, %s97
      %s99 = sphi 0, %s97
      %s100 = sphi 0, %s99
      %s114 = sphi 0, %s100
      %s118 = sphi 0, %s118
      %s120 = sphi 0, %s118
      %s121 = sphi 0, %s120
      %s135 = sphi 0, %s121
      %s139 = sphi 0, %s139
      %s141 = sphi 0, %s139
      %s142 = sphi 0, %s141
      %s156 = sphi 0, %s142
      %s160 = sphi 0, %s160
      %s162 = sphi 0, %s160
      %s163 = sphi 0, %s162
      %s177 = sphi 0, %s163
      %s183 = sphi 0, %s185
      %s186 = sphi 0, %s183
      %s187 = sphi 0, %s186
      %s203 = sphi 0, %s187
    $region4: #{tpu_custom_call.1} parent=1 // loop_header_branch
      %24 = sbr.rel (%p22) target = $region8
    $region5: #{tpu_custom_call.1} parent=1 // loop_body
      %s26 = ssub.s32 %s21, 1
      %s27 = ssub.s32 %s21, 2
      %s28 = sadd.s32 %s21, 1
      %s29 = ssub.s32 %s21, %s28
      %p30 = scmp.eq.s32.totalorder %s29, 0
      %s32 = sadd.s32 %s31, 1
      %s33 = scalar_select %p30, %s31, %s32
      %p36 = pneg %p30
      %p37 = scmp.eq.s32.totalorder %s21, 1
      %p38 = por %p36, %p37
      %p39 = scmp.ne.s32.totalorder %s31, %s34
      %p40 = scmp.eq.s32.totalorder %s21, 0
      %p41 = por %p39, %p40
      %p42 = scmp.ne.s32.totalorder %s31, %s34
      %p43 = scmp.eq.s32.totalorder %s26, 1
      %p44 = por %p42, %p43
      %p45 = scmp.ne.s32.totalorder %s34, %s35
      %p46 = scmp.eq.s32.totalorder %s26, 0
      %p47 = por %p45, %p46
      %p48 = scmp.ne.s32.totalorder %s34, %s35
      %p49 = scmp.eq.s32.totalorder %s27, 1
      %p50 = por %p48, %p49
      %p52 = scmp.ne.s32.totalorder %s35, %s51
      %p53 = scmp.eq.s32.totalorder %s27, 0
      %p54 = por %p52, %p53
      %s56 = sadd.s32 %s55, 1
      %p59 = scmp.eq.s32.totalorder %s21, 1
      %p60 = scmp.ne.s32.totalorder %s55, %s57
      %p61 = scmp.eq.s32.totalorder %s21, 0
      %p62 = por %p60, %p61
      %p63 = scmp.ne.s32.totalorder %s55, %s57
      %p64 = scmp.eq.s32.totalorder %s26, 1
      %p65 = por %p63, %p64
      %p66 = scmp.ne.s32.totalorder %s57, %s58
      %p67 = scmp.eq.s32.totalorder %s26, 0
      %p68 = por %p66, %p67
      %p69 = scmp.ne.s32.totalorder %s57, %s58
      %p70 = scmp.eq.s32.totalorder %s27, 1
      %p71 = por %p69, %p70
      %p73 = scmp.ne.s32.totalorder %s58, %s72
      %p74 = scmp.eq.s32.totalorder %s27, 0
      %p75 = por %p73, %p74
      %s77 = sadd.s32 %s76, 1
      %p80 = scmp.eq.s32.totalorder %s21, 1
      %p81 = scmp.ne.s32.totalorder %s76, %s78
      %p82 = scmp.eq.s32.totalorder %s21, 0
      %p83 = por %p81, %p82
      %p84 = scmp.ne.s32.totalorder %s76, %s78
      %p85 = scmp.eq.s32.totalorder %s26, 1
      %p86 = por %p84, %p85
      %p87 = scmp.ne.s32.totalorder %s78, %s79
      %p88 = scmp.eq.s32.totalorder %s26, 0
      %p89 = por %p87, %p88
      %p90 = scmp.ne.s32.totalorder %s78, %s79
      %p91 = scmp.eq.s32.totalorder %s27, 1
      %p92 = por %p90, %p91
      %p94 = scmp.ne.s32.totalorder %s79, %s93
      %p95 = scmp.eq.s32.totalorder %s27, 0
      %p96 = por %p94, %p95
      %s98 = sadd.s32 %s97, 1
      %p101 = scmp.eq.s32.totalorder %s21, 1
      %p102 = scmp.ne.s32.totalorder %s97, %s99
      %p103 = scmp.eq.s32.totalorder %s21, 0
      %p104 = por %p102, %p103
      %p105 = scmp.ne.s32.totalorder %s97, %s99
      %p106 = scmp.eq.s32.totalorder %s26, 1
      %p107 = por %p105, %p106
      %p108 = scmp.ne.s32.totalorder %s99, %s100
      %p109 = scmp.eq.s32.totalorder %s26, 0
      %p110 = por %p108, %p109
      %p111 = scmp.ne.s32.totalorder %s99, %s100
      %p112 = scmp.eq.s32.totalorder %s27, 1
      %p113 = por %p111, %p112
      %p115 = scmp.ne.s32.totalorder %s100, %s114
      %p116 = scmp.eq.s32.totalorder %s27, 0
      %p117 = por %p115, %p116
      %s119 = sadd.s32 %s118, 1
      %p122 = scmp.eq.s32.totalorder %s21, 1
      %p123 = scmp.ne.s32.totalorder %s118, %s120
      %p124 = scmp.eq.s32.totalorder %s21, 0
      %p125 = por %p123, %p124
      %p126 = scmp.ne.s32.totalorder %s118, %s120
      %p127 = scmp.eq.s32.totalorder %s26, 1
      %p128 = por %p126, %p127
      %p129 = scmp.ne.s32.totalorder %s120, %s121
      %p130 = scmp.eq.s32.totalorder %s26, 0
      %p131 = por %p129, %p130
      %p132 = scmp.ne.s32.totalorder %s120, %s121
      %p133 = scmp.eq.s32.totalorder %s27, 1
      %p134 = por %p132, %p133
      %p136 = scmp.ne.s32.totalorder %s121, %s135
      %p137 = scmp.eq.s32.totalorder %s27, 0
      %p138 = por %p136, %p137
      %s140 = sadd.s32 %s139, 1
      %p143 = scmp.eq.s32.totalorder %s21, 1
      %p144 = scmp.ne.s32.totalorder %s139, %s141
      %p145 = scmp.eq.s32.totalorder %s21, 0
      %p146 = por %p144, %p145
      %p147 = scmp.ne.s32.totalorder %s139, %s141
      %p148 = scmp.eq.s32.totalorder %s26, 1
      %p149 = por %p147, %p148
      %p150 = scmp.ne.s32.totalorder %s141, %s142
      %p151 = scmp.eq.s32.totalorder %s26, 0
      %p152 = por %p150, %p151
      %p153 = scmp.ne.s32.totalorder %s141, %s142
      %p154 = scmp.eq.s32.totalorder %s27, 1
      %p155 = por %p153, %p154
      %p157 = scmp.ne.s32.totalorder %s142, %s156
      %p158 = scmp.eq.s32.totalorder %s27, 0
      %p159 = por %p157, %p158
      %s161 = sadd.s32 %s160, 1
      %p164 = scmp.eq.s32.totalorder %s21, 1
      %p165 = scmp.ne.s32.totalorder %s160, %s162
      %p166 = scmp.eq.s32.totalorder %s21, 0
      %p167 = por %p165, %p166
      %p168 = scmp.ne.s32.totalorder %s160, %s162
      %p169 = scmp.eq.s32.totalorder %s26, 1
      %p170 = por %p168, %p169
      %p171 = scmp.ne.s32.totalorder %s162, %s163
      %p172 = scmp.eq.s32.totalorder %s26, 0
      %p173 = por %p171, %p172
      %p174 = scmp.ne.s32.totalorder %s162, %s163
      %p175 = scmp.eq.s32.totalorder %s27, 1
      %p176 = por %p174, %p175
      %p178 = scmp.ne.s32.totalorder %s163, %s177
      %p179 = scmp.eq.s32.totalorder %s27, 0
      %p180 = por %p178, %p179
      %s181 = ssub.s32 %s21, %s28
      %p182 = scmp.eq.s32.totalorder %s181, 0
      %s184 = sadd.s32 %s183, 1
      %s185 = scalar_select %p182, %s183, %s184
      %p188 = pneg %p182
      %p189 = scmp.eq.s32.totalorder %s21, 1
      %p190 = por %p188, %p189
      %p191 = scmp.ne.s32.totalorder %s183, %s186
      %p192 = scmp.eq.s32.totalorder %s21, 0
      %p193 = por %p191, %p192
      %p194 = scmp.ne.s32.totalorder %s183, %s186
      %p195 = scmp.eq.s32.totalorder %s26, 1
      %p196 = por %p194, %p195
      %p197 = scmp.ne.s32.totalorder %s186, %s187
      %p198 = scmp.eq.s32.totalorder %s26, 0
      %p199 = por %p197, %p198
      %p200 = scmp.ne.s32.totalorder %s186, %s187
      %p201 = scmp.eq.s32.totalorder %s27, 1
      %p202 = por %p200, %p201
      %p204 = scmp.ne.s32.totalorder %s187, %s203
      %p205 = scmp.eq.s32.totalorder %s27, 0
      %p206 = por %p204, %p205
      %p207 = scmp.le.s32.totalorder 1, %s21
      %p208 = scmp.lt.s32.totalorder %s21, 3
      %p209 = pnand %p207, %p208
      %p210 = pneg %p209
      // Predicated region
      $region9: #{tpu_custom_call.1} parent=5 // pred_check
        _
      $region10: #{tpu_custom_call.1} parent=5 // pred_check_branch
        %212 = sbr.rel (%p209) target = $region12
      $region11: #{tpu_custom_call.1} parent=5 // pred_region
        %s213 = ssub.s32 %s21, 1
        // Predicated region
        $region13: #{tpu_custom_call.1} parent=11 // pred_check
          %p214 = pneg %p68
        $region14: #{tpu_custom_call.1} parent=11 // pred_check_branch
          %216 = sbr.rel (%p214) target = $region16
        $region15: #{tpu_custom_call.1} parent=11 // pred_region
          %218 = vsyncadd [#allocation6], 0
          %s219 = sshll.u32 %s1, 4
          %s220 = int_to_ptr.hbm [resolvable:$true] %s219
          %s221 = sshll.u32 [#allocation5], 4
          %s222 = int_to_ptr.vmem [resolvable:$true] %s221
          %227 = dma.hbm_to_vmem [thread:$0]  %s220, 8192, %s222, [#allocation6], 256, 256, 16
        $region16: #{tpu_custom_call.1} parent=11 // pred_fallthru
          _
        // Predicated region
        $region17: #{tpu_custom_call.1} parent=11 // pred_check
          %p228 = pneg %p89
        $region18: #{tpu_custom_call.1} parent=11 // pred_check_branch
          %230 = sbr.rel (%p228) target = $region20
        $region19: #{tpu_custom_call.1} parent=11 // pred_region
          %232 = vsyncadd [#allocation6], 0
          %s234 = sshll.u32 %s2, 4
          %s235 = int_to_ptr.hbm [resolvable:$true] %s234
          %s236 = sshll.u32 [#allocation7], 4
          %s237 = int_to_ptr.vmem [resolvable:$true] %s236
          %239 = dma.hbm_to_vmem [thread:$0]  %s235, 64, %s237, [#allocation6]
        $region20: #{tpu_custom_call.1} parent=11 // pred_fallthru
          _
        // Predicated region
        $region21: #{tpu_custom_call.1} parent=11 // pred_check
          %p240 = pneg %p110
        $region22: #{tpu_custom_call.1} parent=11 // pred_check_branch
          %242 = sbr.rel (%p240) target = $region24
        $region23: #{tpu_custom_call.1} parent=11 // pred_region
          %244 = vsyncadd [#allocation9], 0
          %s245 = sshll.u32 %s3, 4
          %s246 = int_to_ptr.hbm [resolvable:$true] %s245
          %s247 = sshll.u32 [#allocation8], 4
          %s248 = int_to_ptr.vmem [resolvable:$true] %s247
          %253 = dma.hbm_to_vmem [thread:$0]  %s246, 8192, %s248, [#allocation9], 128, 128, 8
        $region24: #{tpu_custom_call.1} parent=11 // pred_fallthru
          _
        // Predicated region
        $region25: #{tpu_custom_call.1} parent=11 // pred_check
          %p254 = pneg %p131
        $region26: #{tpu_custom_call.1} parent=11 // pred_check_branch
          %256 = sbr.rel (%p254) target = $region28
        $region27: #{tpu_custom_call.1} parent=11 // pred_region
          _
        $region28: #{tpu_custom_call.1} parent=11 // pred_fallthru
          _
        // Predicated region
        $region29: #{tpu_custom_call.1} parent=11 // pred_check
          %p257 = pneg %p152
        $region30: #{tpu_custom_call.1} parent=11 // pred_check_branch
          %259 = sbr.rel (%p257) target = $region32
        $region31: #{tpu_custom_call.1} parent=11 // pred_region
          %261 = vsyncadd [#allocation9], 0
          %s262 = sshll.u32 %s5, 4
          %s263 = int_to_ptr.hbm [resolvable:$true] %s262
          %s264 = sshll.u32 [#allocation10], 4
          %s265 = int_to_ptr.vmem [resolvable:$true] %s264
          %270 = dma.hbm_to_vmem [thread:$0]  %s263, 2048, %s265, [#allocation9], 64, 64, 4
        $region32: #{tpu_custom_call.1} parent=11 // pred_fallthru
          _
        // Predicated region
        $region33: #{tpu_custom_call.1} parent=11 // pred_check
          %p271 = pneg %p173
        $region34: #{tpu_custom_call.1} parent=11 // pred_check_branch
          %273 = sbr.rel (%p271) target = $region36
        $region35: #{tpu_custom_call.1} parent=11 // pred_region
          _
        $region36: #{tpu_custom_call.1} parent=11 // pred_fallthru
          _
      $region12: #{tpu_custom_call.1} parent=5 // pred_fallthru
        _
      %p274 = scmp.lt.s32.totalorder %s21, 2
      // Predicated region
      $region37: #{tpu_custom_call.1} parent=5 // pred_check
        %p275 = pneg %p274
      $region38: #{tpu_custom_call.1} parent=5 // pred_check_branch
        %277 = sbr.rel (%p275) target = $region40
      $region39: #{tpu_custom_call.1} parent=5 // pred_region
        // Predicated region
        $region41: #{tpu_custom_call.1} parent=39 // pred_check
          %p278 = pneg %p41
        $region42: #{tpu_custom_call.1} parent=39 // pred_check_branch
          %280 = sbr.rel (%p278) target = $region44
        $region43: #{tpu_custom_call.1} parent=39 // pred_region
          %s281 = sand.u32 %s31, 1
          %s282 = scalar_lea.sflag [#allocation3], %s281
          %s283 = sand.u32 %s31, 1
          %s284 = smul.addr %s283, 32
          %s285 = scalar_lea.vmem [#allocation2], %s284
          %s286 = smul.u32 2, %s21
          %288 = vsyncadd %s282, 0
          %s289 = smul.addr %s286, 2
          %s290 = smul.addr %s289, 8
          %s291 = scalar_lea.hbm %s0, %s290
          %s292 = sshll.u32 %s291, 4
          %s293 = int_to_ptr.hbm [resolvable:$true] %s292
          %s294 = sshll.u32 %s285, 4
          %s295 = int_to_ptr.vmem [resolvable:$true] %s294
          %300 = dma.hbm_to_vmem [thread:$0]  %s293, 512, %s295, %s282, 256, 256, 16
        $region44: #{tpu_custom_call.1} parent=39 // pred_fallthru
          _
      $region40: #{tpu_custom_call.1} parent=5 // pred_fallthru
        _
      %p301 = scmp.le.s32.totalorder 1, %s21
      %p302 = scmp.lt.s32.totalorder %s21, 3
      %p303 = pnand %p301, %p302
      %p304 = pneg %p303
      // Predicated region
      $region45: #{tpu_custom_call.1} parent=5 // pred_check
        _
      $region46: #{tpu_custom_call.1} parent=5 // pred_check_branch
        %306 = sbr.rel (%p303) target = $region48
      $region47: #{tpu_custom_call.1} parent=5 // pred_region
        %s307 = ssub.s32 %s21, 1
        %s308 = sand.u32 %s34, 1
        %s309 = scalar_lea.sflag [#allocation3], %s308
        %s310 = sand.u32 %s34, 1
        %s311 = smul.addr %s310, 32
        %s312 = scalar_lea.vmem [#allocation2], %s311
        // Predicated region
        $region49: #{tpu_custom_call.1} parent=47 // pred_check
          %p313 = pneg %p47
        $region50: #{tpu_custom_call.1} parent=47 // pred_check_branch
          %315 = sbr.rel (%p313) target = $region52
        $region51: #{tpu_custom_call.1} parent=47 // pred_region
          %317 = dma.done %s309, 512
        $region52: #{tpu_custom_call.1} parent=47 // pred_fallthru
          _
        // Predicated region
        $region53: #{tpu_custom_call.1} parent=47 // pred_check
          %p318 = pneg %p68
        $region54: #{tpu_custom_call.1} parent=47 // pred_check_branch
          %320 = sbr.rel (%p318) target = $region56
        $region55: #{tpu_custom_call.1} parent=47 // pred_region
          %322 = dma.done [#allocation6], 8192
        $region56: #{tpu_custom_call.1} parent=47 // pred_fallthru
          _
        // Predicated region
        $region57: #{tpu_custom_call.1} parent=47 // pred_check
          %p323 = pneg %p89
        $region58: #{tpu_custom_call.1} parent=47 // pred_check_branch
          %325 = sbr.rel (%p323) target = $region60
        $region59: #{tpu_custom_call.1} parent=47 // pred_region
          %327 = dma.done [#allocation6], 64
        $region60: #{tpu_custom_call.1} parent=47 // pred_fallthru
          _
        // Predicated region
        $region61: #{tpu_custom_call.1} parent=47 // pred_check
          %p328 = pneg %p110
        $region62: #{tpu_custom_call.1} parent=47 // pred_check_branch
          %330 = sbr.rel (%p328) target = $region64
        $region63: #{tpu_custom_call.1} parent=47 // pred_region
          %332 = dma.done [#allocation9], 8192
        $region64: #{tpu_custom_call.1} parent=47 // pred_fallthru
          _
        // Predicated region
        $region65: #{tpu_custom_call.1} parent=47 // pred_check
          %p333 = pneg %p152
        $region66: #{tpu_custom_call.1} parent=47 // pred_check_branch
          %335 = sbr.rel (%p333) target = $region68
        $region67: #{tpu_custom_call.1} parent=47 // pred_region
          %337 = dma.done [#allocation9], 2048
        $region68: #{tpu_custom_call.1} parent=47 // pred_fallthru
          _
        %s338 = sand.u32 %s34, 1
        %s339 = scalar_lea.sflag [#allocation3], %s338
        %s340 = sand.u32 %s34, 1
        %s341 = smul.addr %s340, 32
        %s342 = scalar_lea.vmem [#allocation2], %s341
        %p343 = pneg %p47
        %p344 = pneg %p44
        %p345 = pneg %p68
        %p346 = pneg %p65
        %p347 = pneg %p89
        %p348 = pneg %p86
        %p349 = pneg %p110
        %p350 = pneg %p107
        %p351 = pneg %p131
        %p352 = pneg %p128
        %p353 = pneg %p152
        %p354 = pneg %p149
        %p355 = pneg %p173
        %p356 = pneg %p170
        %p357 = pneg %p199
        %p358 = pneg %p196
        %s359 = sand.u32 %s186, 1
        %s360 = scalar_lea.sflag [#allocation4], %s359
        %s361 = sand.u32 %s186, 1
        %s362 = smul.addr %s361, 16
        %s363 = scalar_lea.vmem [#allocation11], %s362
        %s364 = smul.u32 2, %s26
        %s365 = smul.u32 2, %s26
        %v366 = vld [vmem:[%s312] sm:$0xff]
        %v367 = vld [vmem:[%s312 + $0x8] sm:$0xff]
        %v368 = vld [vmem:[%s312 + $0x10] sm:$0xff]
        %v369 = vld [vmem:[%s312 + $0x18] sm:$0xff]
        %v370 = vpack.c.bf16 %v368, %v366
        %v371 = vpack.c.bf16 %v369, %v367
        %v372 = vld [vmem:[#allocation5] sm:$0xff]
        %v373 = vld [vmem:[#allocation5 + $0x8] sm:$0xff]
        %v374 = vld [vmem:[#allocation5 + $0x10] sm:$0xff]
        %v375 = vld [vmem:[#allocation5 + $0x18] sm:$0xff]
        %v376 = vld [vmem:[#allocation5 + $0x20] sm:$0xff]
        %v377 = vld [vmem:[#allocation5 + $0x28] sm:$0xff]
        %v378 = vld [vmem:[#allocation5 + $0x30] sm:$0xff]
        %v379 = vld [vmem:[#allocation5 + $0x38] sm:$0xff]
        %v380 = vld [vmem:[#allocation5 + $0x40] sm:$0xff]
        %v381 = vld [vmem:[#allocation5 + $0x48] sm:$0xff]
        %v382 = vld [vmem:[#allocation5 + $0x50] sm:$0xff]
        %v383 = vld [vmem:[#allocation5 + $0x58] sm:$0xff]
        %v384 = vld [vmem:[#allocation5 + $0x60] sm:$0xff]
        %v385 = vld [vmem:[#allocation5 + $0x68] sm:$0xff]
        %v386 = vld [vmem:[#allocation5 + $0x70] sm:$0xff]
        %v387 = vld [vmem:[#allocation5 + $0x78] sm:$0xff]
        %v388 = vld [vmem:[#allocation5 + $0x80] sm:$0xff]
        %v389 = vld [vmem:[#allocation5 + $0x88] sm:$0xff]
        %v390 = vld [vmem:[#allocation5 + $0x90] sm:$0xff]
        %v391 = vld [vmem:[#allocation5 + $0x98] sm:$0xff]
        %v392 = vld [vmem:[#allocation5 + $0xa0] sm:$0xff]
        %v393 = vld [vmem:[#allocation5 + $0xa8] sm:$0xff]
        %v394 = vld [vmem:[#allocation5 + $0xb0] sm:$0xff]
        %v395 = vld [vmem:[#allocation5 + $0xb8] sm:$0xff]
        %v396 = vld [vmem:[#allocation5 + $0xc0] sm:$0xff]
        %v397 = vld [vmem:[#allocation5 + $0xc8] sm:$0xff]
        %v398 = vld [vmem:[#allocation5 + $0xd0] sm:$0xff]
        %v399 = vld [vmem:[#allocation5 + $0xd8] sm:$0xff]
        %v400 = vld [vmem:[#allocation5 + $0xe0] sm:$0xff]
        %v401 = vld [vmem:[#allocation5 + $0xe8] sm:$0xff]
        %v402 = vld [vmem:[#allocation5 + $0xf0] sm:$0xff]
        %v403 = vld [vmem:[#allocation5 + $0xf8] sm:$0xff]
        %v404 = vld [vmem:[#allocation5 + $0x100] sm:$0xff]
        %v405 = vld [vmem:[#allocation5 + $0x108] sm:$0xff]
        %v406 = vld [vmem:[#allocation5 + $0x110] sm:$0xff]
        %v407 = vld [vmem:[#allocation5 + $0x118] sm:$0xff]
        %v408 = vld [vmem:[#allocation5 + $0x120] sm:$0xff]
        %v409 = vld [vmem:[#allocation5 + $0x128] sm:$0xff]
        %v410 = vld [vmem:[#allocation5 + $0x130] sm:$0xff]
        %v411 = vld [vmem:[#allocation5 + $0x138] sm:$0xff]
        %v412 = vld [vmem:[#allocation5 + $0x140] sm:$0xff]
        %v413 = vld [vmem:[#allocation5 + $0x148] sm:$0xff]
        %v414 = vld [vmem:[#allocation5 + $0x150] sm:$0xff]
        %v415 = vld [vmem:[#allocation5 + $0x158] sm:$0xff]
        %v416 = vld [vmem:[#allocation5 + $0x160] sm:$0xff]
        %v417 = vld [vmem:[#allocation5 + $0x168] sm:$0xff]
        %v418 = vld [vmem:[#allocation5 + $0x170] sm:$0xff]
        %v419 = vld [vmem:[#allocation5 + $0x178] sm:$0xff]
        %v420 = vld [vmem:[#allocation5 + $0x180] sm:$0xff]
        %v421 = vld [vmem:[#allocation5 + $0x188] sm:$0xff]
        %v422 = vld [vmem:[#allocation5 + $0x190] sm:$0xff]
        %v423 = vld [vmem:[#allocation5 + $0x198] sm:$0xff]
        %v424 = vld [vmem:[#allocation5 + $0x1a0] sm:$0xff]
        %v425 = vld [vmem:[#allocation5 + $0x1a8] sm:$0xff]
        %v426 = vld [vmem:[#allocation5 + $0x1b0] sm:$0xff]
        %v427 = vld [vmem:[#allocation5 + $0x1b8] sm:$0xff]
        %v428 = vld [vmem:[#allocation5 + $0x1c0] sm:$0xff]
        %v429 = vld [vmem:[#allocation5 + $0x1c8] sm:$0xff]
        %v430 = vld [vmem:[#allocation5 + $0x1d0] sm:$0xff]
        %v431 = vld [vmem:[#allocation5 + $0x1d8] sm:$0xff]
        %v432 = vld [vmem:[#allocation5 + $0x1e0] sm:$0xff]
        %v433 = vld [vmem:[#allocation5 + $0x1e8] sm:$0xff]
        %v434 = vld [vmem:[#allocation5 + $0x1f0] sm:$0xff]
        %v435 = vld [vmem:[#allocation5 + $0x1f8] sm:$0xff]
        %v436 = vld [vmem:[#allocation7] sm:$0xf]
        %v438 = vperm.slane %v436, 0
        %v439 = vperm.slane %v436, 1
        %v440 = vperm.slane %v436, 2
        %v441 = vperm.slane %v436, 3
        %v510 = vunpack.c.l.b16 %v372
        %v511 = vunpack.c.h.b16 %v372
        %v512 = vunpack.c.l.b16 %v373
        %v513 = vunpack.c.h.b16 %v373
        %v514 = vunpack.c.l.b16 %v374
        %v515 = vunpack.c.h.b16 %v374
        %v516 = vunpack.c.l.b16 %v375
        %v517 = vunpack.c.h.b16 %v375
        %v518 = vunpack.c.l.b16 %v376
        %v519 = vunpack.c.h.b16 %v376
        %v520 = vunpack.c.l.b16 %v377
        %v521 = vunpack.c.h.b16 %v377
        %v522 = vunpack.c.l.b16 %v378
        %v523 = vunpack.c.h.b16 %v378
        %v524 = vunpack.c.l.b16 %v379
        %v525 = vunpack.c.h.b16 %v379
        %v526 = vunpack.c.l.b16 %v380
        %v527 = vunpack.c.h.b16 %v380
        %v528 = vunpack.c.l.b16 %v381
        %v529 = vunpack.c.h.b16 %v381
        %v530 = vunpack.c.l.b16 %v382
        %v531 = vunpack.c.h.b16 %v382
        %v532 = vunpack.c.l.b16 %v383
        %v533 = vunpack.c.h.b16 %v383
        %v534 = vunpack.c.l.b16 %v384
        %v535 = vunpack.c.h.b16 %v384
        %v536 = vunpack.c.l.b16 %v385
        %v537 = vunpack.c.h.b16 %v385
        %v538 = vunpack.c.l.b16 %v386
        %v539 = vunpack.c.h.b16 %v386
        %v540 = vunpack.c.l.b16 %v387
        %v541 = vunpack.c.h.b16 %v387
        %v542 = vunpack.c.l.b16 %v388
        %v543 = vunpack.c.h.b16 %v388
        %v544 = vunpack.c.l.b16 %v389
        %v545 = vunpack.c.h.b16 %v389
        %v546 = vunpack.c.l.b16 %v390
        %v547 = vunpack.c.h.b16 %v390
        %v548 = vunpack.c.l.b16 %v391
        %v549 = vunpack.c.h.b16 %v391
        %v550 = vunpack.c.l.b16 %v392
        %v551 = vunpack.c.h.b16 %v392
        %v552 = vunpack.c.l.b16 %v393
        %v553 = vunpack.c.h.b16 %v393
        %v554 = vunpack.c.l.b16 %v394
        %v555 = vunpack.c.h.b16 %v394
        %v556 = vunpack.c.l.b16 %v395
        %v557 = vunpack.c.h.b16 %v395
        %v558 = vunpack.c.l.b16 %v396
        %v559 = vunpack.c.h.b16 %v396
        %v560 = vunpack.c.l.b16 %v397
        %v561 = vunpack.c.h.b16 %v397
        %v562 = vunpack.c.l.b16 %v398
        %v563 = vunpack.c.h.b16 %v398
        %v564 = vunpack.c.l.b16 %v399
        %v565 = vunpack.c.h.b16 %v399
        %v566 = vunpack.c.l.b16 %v400
        %v567 = vunpack.c.h.b16 %v400
        %v568 = vunpack.c.l.b16 %v401
        %v569 = vunpack.c.h.b16 %v401
        %v570 = vunpack.c.l.b16 %v402
        %v571 = vunpack.c.h.b16 %v402
        %v572 = vunpack.c.l.b16 %v403
        %v573 = vunpack.c.h.b16 %v403
        %v574 = vunpack.c.l.b16 %v404
        %v575 = vunpack.c.h.b16 %v404
        %v576 = vunpack.c.l.b16 %v405
        %v577 = vunpack.c.h.b16 %v405
        %v578 = vunpack.c.l.b16 %v406
        %v579 = vunpack.c.h.b16 %v406
        %v580 = vunpack.c.l.b16 %v407
        %v581 = vunpack.c.h.b16 %v407
        %v582 = vunpack.c.l.b16 %v408
        %v583 = vunpack.c.h.b16 %v408
        %v584 = vunpack.c.l.b16 %v409
        %v585 = vunpack.c.h.b16 %v409
        %v586 = vunpack.c.l.b16 %v410
        %v587 = vunpack.c.h.b16 %v410
        %v588 = vunpack.c.l.b16 %v411
        %v589 = vunpack.c.h.b16 %v411
        %v590 = vunpack.c.l.b16 %v412
        %v591 = vunpack.c.h.b16 %v412
        %v592 = vunpack.c.l.b16 %v413
        %v593 = vunpack.c.h.b16 %v413
        %v594 = vunpack.c.l.b16 %v414
        %v595 = vunpack.c.h.b16 %v414
        %v596 = vunpack.c.l.b16 %v415
        %v597 = vunpack.c.h.b16 %v415
        %v598 = vunpack.c.l.b16 %v416
        %v599 = vunpack.c.h.b16 %v416
        %v600 = vunpack.c.l.b16 %v417
        %v601 = vunpack.c.h.b16 %v417
        %v602 = vunpack.c.l.b16 %v418
        %v603 = vunpack.c.h.b16 %v418
        %v604 = vunpack.c.l.b16 %v419
        %v605 = vunpack.c.h.b16 %v419
        %v606 = vunpack.c.l.b16 %v420
        %v607 = vunpack.c.h.b16 %v420
        %v608 = vunpack.c.l.b16 %v421
        %v609 = vunpack.c.h.b16 %v421
        %v610 = vunpack.c.l.b16 %v422
        %v611 = vunpack.c.h.b16 %v422
        %v612 = vunpack.c.l.b16 %v423
        %v613 = vunpack.c.h.b16 %v423
        %v614 = vunpack.c.l.b16 %v424
        %v615 = vunpack.c.h.b16 %v424
        %v616 = vunpack.c.l.b16 %v425
        %v617 = vunpack.c.h.b16 %v425
        %v618 = vunpack.c.l.b16 %v426
        %v619 = vunpack.c.h.b16 %v426
        %v620 = vunpack.c.l.b16 %v427
        %v621 = vunpack.c.h.b16 %v427
        %v622 = vunpack.c.l.b16 %v428
        %v623 = vunpack.c.h.b16 %v428
        %v624 = vunpack.c.l.b16 %v429
        %v625 = vunpack.c.h.b16 %v429
        %v626 = vunpack.c.l.b16 %v430
        %v627 = vunpack.c.h.b16 %v430
        %v628 = vunpack.c.l.b16 %v431
        %v629 = vunpack.c.h.b16 %v431
        %v630 = vunpack.c.l.b16 %v432
        %v631 = vunpack.c.h.b16 %v432
        %v632 = vunpack.c.l.b16 %v433
        %v633 = vunpack.c.h.b16 %v433
        %v634 = vunpack.c.l.b16 %v434
        %v635 = vunpack.c.h.b16 %v434
        %v636 = vunpack.c.l.b16 %v435
        %v637 = vunpack.c.h.b16 %v435
        %v638 = vpack.c.b16 %v514, %v510
        %v639 = vpack.c.b16 %v515, %v511
        %v640 = vpack.c.b16 %v516, %v512
        %v641 = vpack.c.b16 %v517, %v513
        %v642 = vpack.c.b16 %v522, %v518
        %v643 = vpack.c.b16 %v523, %v519
        %v644 = vpack.c.b16 %v524, %v520
        %v645 = vpack.c.b16 %v525, %v521
        %v646 = vpack.c.b16 %v530, %v526
        %v647 = vpack.c.b16 %v531, %v527
        %v648 = vpack.c.b16 %v532, %v528
        %v649 = vpack.c.b16 %v533, %v529
        %v650 = vpack.c.b16 %v538, %v534
        %v651 = vpack.c.b16 %v539, %v535
        %v652 = vpack.c.b16 %v540, %v536
        %v653 = vpack.c.b16 %v541, %v537
        %v654 = vpack.c.b16 %v546, %v542
        %v655 = vpack.c.b16 %v547, %v543
        %v656 = vpack.c.b16 %v548, %v544
        %v657 = vpack.c.b16 %v549, %v545
        %v658 = vpack.c.b16 %v554, %v550
        %v659 = vpack.c.b16 %v555, %v551
        %v660 = vpack.c.b16 %v556, %v552
        %v661 = vpack.c.b16 %v557, %v553
        %v662 = vpack.c.b16 %v562, %v558
        %v663 = vpack.c.b16 %v563, %v559
        %v664 = vpack.c.b16 %v564, %v560
        %v665 = vpack.c.b16 %v565, %v561
        %v666 = vpack.c.b16 %v570, %v566
        %v667 = vpack.c.b16 %v571, %v567
        %v668 = vpack.c.b16 %v572, %v568
        %v669 = vpack.c.b16 %v573, %v569
        %v670 = vpack.c.b16 %v578, %v574
        %v671 = vpack.c.b16 %v579, %v575
        %v672 = vpack.c.b16 %v580, %v576
        %v673 = vpack.c.b16 %v581, %v577
        %v674 = vpack.c.b16 %v586, %v582
        %v675 = vpack.c.b16 %v587, %v583
        %v676 = vpack.c.b16 %v588, %v584
        %v677 = vpack.c.b16 %v589, %v585
        %v678 = vpack.c.b16 %v594, %v590
        %v679 = vpack.c.b16 %v595, %v591
        %v680 = vpack.c.b16 %v596, %v592
        %v681 = vpack.c.b16 %v597, %v593
        %v682 = vpack.c.b16 %v602, %v598
        %v683 = vpack.c.b16 %v603, %v599
        %v684 = vpack.c.b16 %v604, %v600
        %v685 = vpack.c.b16 %v605, %v601
        %v686 = vpack.c.b16 %v610, %v606
        %v687 = vpack.c.b16 %v611, %v607
        %v688 = vpack.c.b16 %v612, %v608
        %v689 = vpack.c.b16 %v613, %v609
        %v690 = vpack.c.b16 %v618, %v614
        %v691 = vpack.c.b16 %v619, %v615
        %v692 = vpack.c.b16 %v620, %v616
        %v693 = vpack.c.b16 %v621, %v617
        %v694 = vpack.c.b16 %v626, %v622
        %v695 = vpack.c.b16 %v627, %v623
        %v696 = vpack.c.b16 %v628, %v624
        %v697 = vpack.c.b16 %v629, %v625
        %v698 = vpack.c.b16 %v634, %v630
        %v699 = vpack.c.b16 %v635, %v631
        %v700 = vpack.c.b16 %v636, %v632
        %v701 = vpack.c.b16 %v637, %v633
        %766 = vmatpush.bf16.msra.mxu0 %v666
        %767 = vmatpush.bf16.msra.mxu0 %v662
        %768 = vmatpush.bf16.msra.mxu0 %v658
        %769 = vmatpush.bf16.msra.mxu0 %v654
        %770 = vmatpush.bf16.msra.mxu0 %v650
        %771 = vmatpush.bf16.msra.mxu0 %v646
        %772 = vmatpush.bf16.msra.mxu0 %v642
        %773 = vmatpush.bf16.msra.mxu0 %v638
        %774 = vmatmul.bf16.gmra.mxu0 %v370
        %v775 = vpop.f32.mrf.mxu0
        %v776 = vadd.f32 %v438, %v775
        %v777 = vpop.f32.mrf.mxu0
        %v778 = vadd.f32 %v438, %v777
        %779 = vdwg.mxu0
        %780 = vmatpush.bf16.msra.mxu0 %v698
        %781 = vmatpush.bf16.msra.mxu0 %v694
        %782 = vmatpush.bf16.msra.mxu0 %v690
        %783 = vmatpush.bf16.msra.mxu0 %v686
        %784 = vmatpush.bf16.msra.mxu0 %v682
        %785 = vmatpush.bf16.msra.mxu0 %v678
        %786 = vmatpush.bf16.msra.mxu0 %v674
        %787 = vmatpush.bf16.msra.mxu0 %v670
        %788 = vmatmul.bf16.gmra.mxu0 %v371
        %v789 = vpop.f32.mrf.mxu0
        %v790 = vadd.f32 %v776, %v789
        %v791 = vpop.f32.mrf.mxu0
        %v792 = vadd.f32 %v778, %v791
        %793 = vdwg.mxu0
        %794 = vmatpush.bf16.msra.mxu0 %v667
        %795 = vmatpush.bf16.msra.mxu0 %v663
        %796 = vmatpush.bf16.msra.mxu0 %v659
        %797 = vmatpush.bf16.msra.mxu0 %v655
        %798 = vmatpush.bf16.msra.mxu0 %v651
        %799 = vmatpush.bf16.msra.mxu0 %v647
        %800 = vmatpush.bf16.msra.mxu0 %v643
        %801 = vmatpush.bf16.msra.mxu0 %v639
        %802 = vmatmul.bf16.gmra.mxu0 %v370
        %v803 = vpop.f32.mrf.mxu0
        %v804 = vadd.f32 %v439, %v803
        %v805 = vpop.f32.mrf.mxu0
        %v806 = vadd.f32 %v439, %v805
        %807 = vdwg.mxu0
        %808 = vmatpush.bf16.msra.mxu0 %v699
        %809 = vmatpush.bf16.msra.mxu0 %v695
        %810 = vmatpush.bf16.msra.mxu0 %v691
        %811 = vmatpush.bf16.msra.mxu0 %v687
        %812 = vmatpush.bf16.msra.mxu0 %v683
        %813 = vmatpush.bf16.msra.mxu0 %v679
        %814 = vmatpush.bf16.msra.mxu0 %v675
        %815 = vmatpush.bf16.msra.mxu0 %v671
        %816 = vmatmul.bf16.gmra.mxu0 %v371
        %v817 = vpop.f32.mrf.mxu0
        %v818 = vadd.f32 %v804, %v817
        %v819 = vpop.f32.mrf.mxu0
        %v820 = vadd.f32 %v806, %v819
        %821 = vdwg.mxu0
        %822 = vmatpush.bf16.msra.mxu0 %v668
        %823 = vmatpush.bf16.msra.mxu0 %v664
        %824 = vmatpush.bf16.msra.mxu0 %v660
        %825 = vmatpush.bf16.msra.mxu0 %v656
        %826 = vmatpush.bf16.msra.mxu0 %v652
        %827 = vmatpush.bf16.msra.mxu0 %v648
        %828 = vmatpush.bf16.msra.mxu0 %v644
        %829 = vmatpush.bf16.msra.mxu0 %v640
        %830 = vmatmul.bf16.gmra.mxu0 %v370
        %v831 = vpop.f32.mrf.mxu0
        %v832 = vadd.f32 %v440, %v831
        %v833 = vpop.f32.mrf.mxu0
        %v834 = vadd.f32 %v440, %v833
        %835 = vdwg.mxu0
        %836 = vmatpush.bf16.msra.mxu0 %v700
        %837 = vmatpush.bf16.msra.mxu0 %v696
        %838 = vmatpush.bf16.msra.mxu0 %v692
        %839 = vmatpush.bf16.msra.mxu0 %v688
        %840 = vmatpush.bf16.msra.mxu0 %v684
        %841 = vmatpush.bf16.msra.mxu0 %v680
        %842 = vmatpush.bf16.msra.mxu0 %v676
        %843 = vmatpush.bf16.msra.mxu0 %v672
        %844 = vmatmul.bf16.gmra.mxu0 %v371
        %v845 = vpop.f32.mrf.mxu0
        %v846 = vadd.f32 %v832, %v845
        %v847 = vpop.f32.mrf.mxu0
        %v848 = vadd.f32 %v834, %v847
        %849 = vdwg.mxu0
        %850 = vmatpush.bf16.msra.mxu0 %v669
        %851 = vmatpush.bf16.msra.mxu0 %v665
        %852 = vmatpush.bf16.msra.mxu0 %v661
        %853 = vmatpush.bf16.msra.mxu0 %v657
        %854 = vmatpush.bf16.msra.mxu0 %v653
        %855 = vmatpush.bf16.msra.mxu0 %v649
        %856 = vmatpush.bf16.msra.mxu0 %v645
        %857 = vmatpush.bf16.msra.mxu0 %v641
        %858 = vmatmul.bf16.gmra.mxu0 %v370
        %v859 = vpop.f32.mrf.mxu0
        %v860 = vadd.f32 %v441, %v859
        %v861 = vpop.f32.mrf.mxu0
        %v862 = vadd.f32 %v441, %v861
        %863 = vdwg.mxu0
        %864 = vmatpush.bf16.msra.mxu0 %v701
        %865 = vmatpush.bf16.msra.mxu0 %v697
        %866 = vmatpush.bf16.msra.mxu0 %v693
        %867 = vmatpush.bf16.msra.mxu0 %v689
        %868 = vmatpush.bf16.msra.mxu0 %v685
        %869 = vmatpush.bf16.msra.mxu0 %v681
        %870 = vmatpush.bf16.msra.mxu0 %v677
        %871 = vmatpush.bf16.msra.mxu0 %v673
        %872 = vmatmul.bf16.gmra.mxu0 %v371
        %v873 = vpop.f32.mrf.mxu0
        %v874 = vadd.f32 %v860, %v873
        %v875 = vpop.f32.mrf.mxu0
        %v876 = vadd.f32 %v862, %v875
        %877 = vdwg.mxu0
        %v878 = vmax.f32 %v790, 0.0
        %v879 = vmax.f32 %v818, 0.0
        %v880 = vmax.f32 %v846, 0.0
        %v881 = vmax.f32 %v874, 0.0
        %v882 = vmax.f32 %v792, 0.0
        %v883 = vmax.f32 %v820, 0.0
        %v884 = vmax.f32 %v848, 0.0
        %v885 = vmax.f32 %v876, 0.0
        %v886 = vpack.c.bf16 %v882, %v878
        %v887 = vpack.c.bf16 %v883, %v879
        %v888 = vpack.c.bf16 %v884, %v880
        %v889 = vpack.c.bf16 %v885, %v881
        %v890 = vld [vmem:[#allocation8] sm:$0xff]
        %v891 = vld [vmem:[#allocation8 + $0x8] sm:$0xff]
        %v892 = vld [vmem:[#allocation8 + $0x10] sm:$0xff]
        %v893 = vld [vmem:[#allocation8 + $0x18] sm:$0xff]
        %v894 = vld [vmem:[#allocation8 + $0x20] sm:$0xff]
        %v895 = vld [vmem:[#allocation8 + $0x28] sm:$0xff]
        %v896 = vld [vmem:[#allocation8 + $0x30] sm:$0xff]
        %v897 = vld [vmem:[#allocation8 + $0x38] sm:$0xff]
        %v898 = vld [vmem:[#allocation8 + $0x40] sm:$0xff]
        %v899 = vld [vmem:[#allocation8 + $0x48] sm:$0xff]
        %v900 = vld [vmem:[#allocation8 + $0x50] sm:$0xff]
        %v901 = vld [vmem:[#allocation8 + $0x58] sm:$0xff]
        %v902 = vld [vmem:[#allocation8 + $0x60] sm:$0xff]
        %v903 = vld [vmem:[#allocation8 + $0x68] sm:$0xff]
        %v904 = vld [vmem:[#allocation8 + $0x70] sm:$0xff]
        %v905 = vld [vmem:[#allocation8 + $0x78] sm:$0xff]
        %v906 = vld [vmem:[#allocation8 + $0x80] sm:$0xff]
        %v907 = vld [vmem:[#allocation8 + $0x88] sm:$0xff]
        %v908 = vld [vmem:[#allocation8 + $0x90] sm:$0xff]
        %v909 = vld [vmem:[#allocation8 + $0x98] sm:$0xff]
        %v910 = vld [vmem:[#allocation8 + $0xa0] sm:$0xff]
        %v911 = vld [vmem:[#allocation8 + $0xa8] sm:$0xff]
        %v912 = vld [vmem:[#allocation8 + $0xb0] sm:$0xff]
        %v913 = vld [vmem:[#allocation8 + $0xb8] sm:$0xff]
        %v914 = vld [vmem:[#allocation8 + $0xc0] sm:$0xff]
        %v915 = vld [vmem:[#allocation8 + $0xc8] sm:$0xff]
        %v916 = vld [vmem:[#allocation8 + $0xd0] sm:$0xff]
        %v917 = vld [vmem:[#allocation8 + $0xd8] sm:$0xff]
        %v918 = vld [vmem:[#allocation8 + $0xe0] sm:$0xff]
        %v919 = vld [vmem:[#allocation8 + $0xe8] sm:$0xff]
        %v920 = vld [vmem:[#allocation8 + $0xf0] sm:$0xff]
        %v921 = vld [vmem:[#allocation8 + $0xf8] sm:$0xff]
        %v922 = vld [vmem:[#allocation8 + $0x100] sm:$0xff]
        %v923 = vld [vmem:[#allocation8 + $0x108] sm:$0xff]
        %v924 = vld [vmem:[#allocation8 + $0x110] sm:$0xff]
        %v925 = vld [vmem:[#allocation8 + $0x118] sm:$0xff]
        %v926 = vld [vmem:[#allocation8 + $0x120] sm:$0xff]
        %v927 = vld [vmem:[#allocation8 + $0x128] sm:$0xff]
        %v928 = vld [vmem:[#allocation8 + $0x130] sm:$0xff]
        %v929 = vld [vmem:[#allocation8 + $0x138] sm:$0xff]
        %v930 = vld [vmem:[#allocation8 + $0x140] sm:$0xff]
        %v931 = vld [vmem:[#allocation8 + $0x148] sm:$0xff]
        %v932 = vld [vmem:[#allocation8 + $0x150] sm:$0xff]
        %v933 = vld [vmem:[#allocation8 + $0x158] sm:$0xff]
        %v934 = vld [vmem:[#allocation8 + $0x160] sm:$0xff]
        %v935 = vld [vmem:[#allocation8 + $0x168] sm:$0xff]
        %v936 = vld [vmem:[#allocation8 + $0x170] sm:$0xff]
        %v937 = vld [vmem:[#allocation8 + $0x178] sm:$0xff]
        %v938 = vld [vmem:[#allocation8 + $0x180] sm:$0xff]
        %v939 = vld [vmem:[#allocation8 + $0x188] sm:$0xff]
        %v940 = vld [vmem:[#allocation8 + $0x190] sm:$0xff]
        %v941 = vld [vmem:[#allocation8 + $0x198] sm:$0xff]
        %v942 = vld [vmem:[#allocation8 + $0x1a0] sm:$0xff]
        %v943 = vld [vmem:[#allocation8 + $0x1a8] sm:$0xff]
        %v944 = vld [vmem:[#allocation8 + $0x1b0] sm:$0xff]
        %v945 = vld [vmem:[#allocation8 + $0x1b8] sm:$0xff]
        %v946 = vld [vmem:[#allocation8 + $0x1c0] sm:$0xff]
        %v947 = vld [vmem:[#allocation8 + $0x1c8] sm:$0xff]
        %v948 = vld [vmem:[#allocation8 + $0x1d0] sm:$0xff]
        %v949 = vld [vmem:[#allocation8 + $0x1d8] sm:$0xff]
        %v950 = vld [vmem:[#allocation8 + $0x1e0] sm:$0xff]
        %v951 = vld [vmem:[#allocation8 + $0x1e8] sm:$0xff]
        %v952 = vld [vmem:[#allocation8 + $0x1f0] sm:$0xff]
        %v953 = vld [vmem:[#allocation8 + $0x1f8] sm:$0xff]
        %v954 = vld [vmem:[%s4] sm:$0x3]
        %v956 = vperm.slane %v954, 0
        %v957 = vperm.slane %v954, 1
        %v1024 = vunpack.c.l.b16 %v890
        %v1025 = vunpack.c.h.b16 %v890
        %v1026 = vunpack.c.l.b16 %v891
        %v1027 = vunpack.c.h.b16 %v891
        %v1028 = vunpack.c.l.b16 %v892
        %v1029 = vunpack.c.h.b16 %v892
        %v1030 = vunpack.c.l.b16 %v893
        %v1031 = vunpack.c.h.b16 %v893
        %v1032 = vunpack.c.l.b16 %v894
        %v1033 = vunpack.c.h.b16 %v894
        %v1034 = vunpack.c.l.b16 %v895
        %v1035 = vunpack.c.h.b16 %v895
        %v1036 = vunpack.c.l.b16 %v896
        %v1037 = vunpack.c.h.b16 %v896
        %v1038 = vunpack.c.l.b16 %v897
        %v1039 = vunpack.c.h.b16 %v897
        %v1040 = vunpack.c.l.b16 %v898
        %v1041 = vunpack.c.h.b16 %v898
        %v1042 = vunpack.c.l.b16 %v899
        %v1043 = vunpack.c.h.b16 %v899
        %v1044 = vunpack.c.l.b16 %v900
        %v1045 = vunpack.c.h.b16 %v900
        %v1046 = vunpack.c.l.b16 %v901
        %v1047 = vunpack.c.h.b16 %v901
        %v1048 = vunpack.c.l.b16 %v902
        %v1049 = vunpack.c.h.b16 %v902
        %v1050 = vunpack.c.l.b16 %v903
        %v1051 = vunpack.c.h.b16 %v903
        %v1052 = vunpack.c.l.b16 %v904
        %v1053 = vunpack.c.h.b16 %v904
        %v1054 = vunpack.c.l.b16 %v905
        %v1055 = vunpack.c.h.b16 %v905
        %v1056 = vunpack.c.l.b16 %v906
        %v1057 = vunpack.c.h.b16 %v906
        %v1058 = vunpack.c.l.b16 %v907
        %v1059 = vunpack.c.h.b16 %v907
        %v1060 = vunpack.c.l.b16 %v908
        %v1061 = vunpack.c.h.b16 %v908
        %v1062 = vunpack.c.l.b16 %v909
        %v1063 = vunpack.c.h.b16 %v909
        %v1064 = vunpack.c.l.b16 %v910
        %v1065 = vunpack.c.h.b16 %v910
        %v1066 = vunpack.c.l.b16 %v911
        %v1067 = vunpack.c.h.b16 %v911
        %v1068 = vunpack.c.l.b16 %v912
        %v1069 = vunpack.c.h.b16 %v912
        %v1070 = vunpack.c.l.b16 %v913
        %v1071 = vunpack.c.h.b16 %v913
        %v1072 = vunpack.c.l.b16 %v914
        %v1073 = vunpack.c.h.b16 %v914
        %v1074 = vunpack.c.l.b16 %v915
        %v1075 = vunpack.c.h.b16 %v915
        %v1076 = vunpack.c.l.b16 %v916
        %v1077 = vunpack.c.h.b16 %v916
        %v1078 = vunpack.c.l.b16 %v917
        %v1079 = vunpack.c.h.b16 %v917
        %v1080 = vunpack.c.l.b16 %v918
        %v1081 = vunpack.c.h.b16 %v918
        %v1082 = vunpack.c.l.b16 %v919
        %v1083 = vunpack.c.h.b16 %v919
        %v1084 = vunpack.c.l.b16 %v920
        %v1085 = vunpack.c.h.b16 %v920
        %v1086 = vunpack.c.l.b16 %v921
        %v1087 = vunpack.c.h.b16 %v921
        %v1088 = vunpack.c.l.b16 %v922
        %v1089 = vunpack.c.h.b16 %v922
        %v1090 = vunpack.c.l.b16 %v923
        %v1091 = vunpack.c.h.b16 %v923
        %v1092 = vunpack.c.l.b16 %v924
        %v1093 = vunpack.c.h.b16 %v924
        %v1094 = vunpack.c.l.b16 %v925
        %v1095 = vunpack.c.h.b16 %v925
        %v1096 = vunpack.c.l.b16 %v926
        %v1097 = vunpack.c.h.b16 %v926
        %v1098 = vunpack.c.l.b16 %v927
        %v1099 = vunpack.c.h.b16 %v927
        %v1100 = vunpack.c.l.b16 %v928
        %v1101 = vunpack.c.h.b16 %v928
        %v1102 = vunpack.c.l.b16 %v929
        %v1103 = vunpack.c.h.b16 %v929
        %v1104 = vunpack.c.l.b16 %v930
        %v1105 = vunpack.c.h.b16 %v930
        %v1106 = vunpack.c.l.b16 %v931
        %v1107 = vunpack.c.h.b16 %v931
        %v1108 = vunpack.c.l.b16 %v932
        %v1109 = vunpack.c.h.b16 %v932
        %v1110 = vunpack.c.l.b16 %v933
        %v1111 = vunpack.c.h.b16 %v933
        %v1112 = vunpack.c.l.b16 %v934
        %v1113 = vunpack.c.h.b16 %v934
        %v1114 = vunpack.c.l.b16 %v935
        %v1115 = vunpack.c.h.b16 %v935
        %v1116 = vunpack.c.l.b16 %v936
        %v1117 = vunpack.c.h.b16 %v936
        %v1118 = vunpack.c.l.b16 %v937
        %v1119 = vunpack.c.h.b16 %v937
        %v1120 = vunpack.c.l.b16 %v938
        %v1121 = vunpack.c.h.b16 %v938
        %v1122 = vunpack.c.l.b16 %v939
        %v1123 = vunpack.c.h.b16 %v939
        %v1124 = vunpack.c.l.b16 %v940
        %v1125 = vunpack.c.h.b16 %v940
        %v1126 = vunpack.c.l.b16 %v941
        %v1127 = vunpack.c.h.b16 %v941
        %v1128 = vunpack.c.l.b16 %v942
        %v1129 = vunpack.c.h.b16 %v942
        %v1130 = vunpack.c.l.b16 %v943
        %v1131 = vunpack.c.h.b16 %v943
        %v1132 = vunpack.c.l.b16 %v944
        %v1133 = vunpack.c.h.b16 %v944
        %v1134 = vunpack.c.l.b16 %v945
        %v1135 = vunpack.c.h.b16 %v945
        %v1136 = vunpack.c.l.b16 %v946
        %v1137 = vunpack.c.h.b16 %v946
        %v1138 = vunpack.c.l.b16 %v947
        %v1139 = vunpack.c.h.b16 %v947
        %v1140 = vunpack.c.l.b16 %v948
        %v1141 = vunpack.c.h.b16 %v948
        %v1142 = vunpack.c.l.b16 %v949
        %v1143 = vunpack.c.h.b16 %v949
        %v1144 = vunpack.c.l.b16 %v950
        %v1145 = vunpack.c.h.b16 %v950
        %v1146 = vunpack.c.l.b16 %v951
        %v1147 = vunpack.c.h.b16 %v951
        %v1148 = vunpack.c.l.b16 %v952
        %v1149 = vunpack.c.h.b16 %v952
        %v1150 = vunpack.c.l.b16 %v953
        %v1151 = vunpack.c.h.b16 %v953
        %v1152 = vpack.c.b16 %v1026, %v1024
        %v1153 = vpack.c.b16 %v1027, %v1025
        %v1154 = vpack.c.b16 %v1030, %v1028
        %v1155 = vpack.c.b16 %v1031, %v1029
        %v1156 = vpack.c.b16 %v1034, %v1032
        %v1157 = vpack.c.b16 %v1035, %v1033
        %v1158 = vpack.c.b16 %v1038, %v1036
        %v1159 = vpack.c.b16 %v1039, %v1037
        %v1160 = vpack.c.b16 %v1042, %v1040
        %v1161 = vpack.c.b16 %v1043, %v1041
        %v1162 = vpack.c.b16 %v1046, %v1044
        %v1163 = vpack.c.b16 %v1047, %v1045
        %v1164 = vpack.c.b16 %v1050, %v1048
        %v1165 = vpack.c.b16 %v1051, %v1049
        %v1166 = vpack.c.b16 %v1054, %v1052
        %v1167 = vpack.c.b16 %v1055, %v1053
        %v1168 = vpack.c.b16 %v1058, %v1056
        %v1169 = vpack.c.b16 %v1059, %v1057
        %v1170 = vpack.c.b16 %v1062, %v1060
        %v1171 = vpack.c.b16 %v1063, %v1061
        %v1172 = vpack.c.b16 %v1066, %v1064
        %v1173 = vpack.c.b16 %v1067, %v1065
        %v1174 = vpack.c.b16 %v1070, %v1068
        %v1175 = vpack.c.b16 %v1071, %v1069
        %v1176 = vpack.c.b16 %v1074, %v1072
        %v1177 = vpack.c.b16 %v1075, %v1073
        %v1178 = vpack.c.b16 %v1078, %v1076
        %v1179 = vpack.c.b16 %v1079, %v1077
        %v1180 = vpack.c.b16 %v1082, %v1080
        %v1181 = vpack.c.b16 %v1083, %v1081
        %v1182 = vpack.c.b16 %v1086, %v1084
        %v1183 = vpack.c.b16 %v1087, %v1085
        %v1184 = vpack.c.b16 %v1090, %v1088
        %v1185 = vpack.c.b16 %v1091, %v1089
        %v1186 = vpack.c.b16 %v1094, %v1092
        %v1187 = vpack.c.b16 %v1095, %v1093
        %v1188 = vpack.c.b16 %v1098, %v1096
        %v1189 = vpack.c.b16 %v1099, %v1097
        %v1190 = vpack.c.b16 %v1102, %v1100
        %v1191 = vpack.c.b16 %v1103, %v1101
        %v1192 = vpack.c.b16 %v1106, %v1104
        %v1193 = vpack.c.b16 %v1107, %v1105
        %v1194 = vpack.c.b16 %v1110, %v1108
        %v1195 = vpack.c.b16 %v1111, %v1109
        %v1196 = vpack.c.b16 %v1114, %v1112
        %v1197 = vpack.c.b16 %v1115, %v1113
        %v1198 = vpack.c.b16 %v1118, %v1116
        %v1199 = vpack.c.b16 %v1119, %v1117
        %v1200 = vpack.c.b16 %v1122, %v1120
        %v1201 = vpack.c.b16 %v1123, %v1121
        %v1202 = vpack.c.b16 %v1126, %v1124
        %v1203 = vpack.c.b16 %v1127, %v1125
        %v1204 = vpack.c.b16 %v1130, %v1128
        %v1205 = vpack.c.b16 %v1131, %v1129
        %v1206 = vpack.c.b16 %v1134, %v1132
        %v1207 = vpack.c.b16 %v1135, %v1133
        %v1208 = vpack.c.b16 %v1138, %v1136
        %v1209 = vpack.c.b16 %v1139, %v1137
        %v1210 = vpack.c.b16 %v1142, %v1140
        %v1211 = vpack.c.b16 %v1143, %v1141
        %v1212 = vpack.c.b16 %v1146, %v1144
        %v1213 = vpack.c.b16 %v1147, %v1145
        %v1214 = vpack.c.b16 %v1150, %v1148
        %v1215 = vpack.c.b16 %v1151, %v1149
        %1280 = vmatpush.bf16.msra.mxu0 %v1166
        %1281 = vmatpush.bf16.msra.mxu0 %v1164
        %1282 = vmatpush.bf16.msra.mxu0 %v1162
        %1283 = vmatpush.bf16.msra.mxu0 %v1160
        %1284 = vmatpush.bf16.msra.mxu0 %v1158
        %1285 = vmatpush.bf16.msra.mxu0 %v1156
        %1286 = vmatpush.bf16.msra.mxu0 %v1154
        %1287 = vmatpush.bf16.msra.mxu0 %v1152
        %1288 = vmatmul.bf16.gmra.mxu0 %v886
        %v1289 = vpop.f32.mrf.mxu0
        %v1290 = vadd.f32 %v956, %v1289
        %v1291 = vpop.f32.mrf.mxu0
        %v1292 = vadd.f32 %v956, %v1291
        %1293 = vdwg.mxu0
        %1294 = vmatpush.bf16.msra.mxu0 %v1182
        %1295 = vmatpush.bf16.msra.mxu0 %v1180
        %1296 = vmatpush.bf16.msra.mxu0 %v1178
        %1297 = vmatpush.bf16.msra.mxu0 %v1176
        %1298 = vmatpush.bf16.msra.mxu0 %v1174
        %1299 = vmatpush.bf16.msra.mxu0 %v1172
        %1300 = vmatpush.bf16.msra.mxu0 %v1170
        %1301 = vmatpush.bf16.msra.mxu0 %v1168
        %1302 = vmatmul.bf16.gmra.mxu0 %v887
        %v1303 = vpop.f32.mrf.mxu0
        %v1304 = vadd.f32 %v1290, %v1303
        %v1305 = vpop.f32.mrf.mxu0
        %v1306 = vadd.f32 %v1292, %v1305
        %1307 = vdwg.mxu0
        %1308 = vmatpush.bf16.msra.mxu0 %v1198
        %1309 = vmatpush.bf16.msra.mxu0 %v1196
        %1310 = vmatpush.bf16.msra.mxu0 %v1194
        %1311 = vmatpush.bf16.msra.mxu0 %v1192
        %1312 = vmatpush.bf16.msra.mxu0 %v1190
        %1313 = vmatpush.bf16.msra.mxu0 %v1188
        %1314 = vmatpush.bf16.msra.mxu0 %v1186
        %1315 = vmatpush.bf16.msra.mxu0 %v1184
        %1316 = vmatmul.bf16.gmra.mxu0 %v888
        %v1317 = vpop.f32.mrf.mxu0
        %v1318 = vadd.f32 %v1304, %v1317
        %v1319 = vpop.f32.mrf.mxu0
        %v1320 = vadd.f32 %v1306, %v1319
        %1321 = vdwg.mxu0
        %1322 = vmatpush.bf16.msra.mxu0 %v1214
        %1323 = vmatpush.bf16.msra.mxu0 %v1212
        %1324 = vmatpush.bf16.msra.mxu0 %v1210
        %1325 = vmatpush.bf16.msra.mxu0 %v1208
        %1326 = vmatpush.bf16.msra.mxu0 %v1206
        %1327 = vmatpush.bf16.msra.mxu0 %v1204
        %1328 = vmatpush.bf16.msra.mxu0 %v1202
        %1329 = vmatpush.bf16.msra.mxu0 %v1200
        %1330 = vmatmul.bf16.gmra.mxu0 %v889
        %v1331 = vpop.f32.mrf.mxu0
        %v1332 = vadd.f32 %v1318, %v1331
        %v1333 = vpop.f32.mrf.mxu0
        %v1334 = vadd.f32 %v1320, %v1333
        %1335 = vdwg.mxu0
        %1336 = vmatpush.bf16.msra.mxu0 %v1167
        %1337 = vmatpush.bf16.msra.mxu0 %v1165
        %1338 = vmatpush.bf16.msra.mxu0 %v1163
        %1339 = vmatpush.bf16.msra.mxu0 %v1161
        %1340 = vmatpush.bf16.msra.mxu0 %v1159
        %1341 = vmatpush.bf16.msra.mxu0 %v1157
        %1342 = vmatpush.bf16.msra.mxu0 %v1155
        %1343 = vmatpush.bf16.msra.mxu0 %v1153
        %1344 = vmatmul.bf16.gmra.mxu0 %v886
        %v1345 = vpop.f32.mrf.mxu0
        %v1346 = vadd.f32 %v957, %v1345
        %v1347 = vpop.f32.mrf.mxu0
        %v1348 = vadd.f32 %v957, %v1347
        %1349 = vdwg.mxu0
        %1350 = vmatpush.bf16.msra.mxu0 %v1183
        %1351 = vmatpush.bf16.msra.mxu0 %v1181
        %1352 = vmatpush.bf16.msra.mxu0 %v1179
        %1353 = vmatpush.bf16.msra.mxu0 %v1177
        %1354 = vmatpush.bf16.msra.mxu0 %v1175
        %1355 = vmatpush.bf16.msra.mxu0 %v1173
        %1356 = vmatpush.bf16.msra.mxu0 %v1171
        %1357 = vmatpush.bf16.msra.mxu0 %v1169
        %1358 = vmatmul.bf16.gmra.mxu0 %v887
        %v1359 = vpop.f32.mrf.mxu0
        %v1360 = vadd.f32 %v1346, %v1359
        %v1361 = vpop.f32.mrf.mxu0
        %v1362 = vadd.f32 %v1348, %v1361
        %1363 = vdwg.mxu0
        %1364 = vmatpush.bf16.msra.mxu0 %v1199
        %1365 = vmatpush.bf16.msra.mxu0 %v1197
        %1366 = vmatpush.bf16.msra.mxu0 %v1195
        %1367 = vmatpush.bf16.msra.mxu0 %v1193
        %1368 = vmatpush.bf16.msra.mxu0 %v1191
        %1369 = vmatpush.bf16.msra.mxu0 %v1189
        %1370 = vmatpush.bf16.msra.mxu0 %v1187
        %1371 = vmatpush.bf16.msra.mxu0 %v1185
        %1372 = vmatmul.bf16.gmra.mxu0 %v888
        %v1373 = vpop.f32.mrf.mxu0
        %v1374 = vadd.f32 %v1360, %v1373
        %v1375 = vpop.f32.mrf.mxu0
        %v1376 = vadd.f32 %v1362, %v1375
        %1377 = vdwg.mxu0
        %1378 = vmatpush.bf16.msra.mxu0 %v1215
        %1379 = vmatpush.bf16.msra.mxu0 %v1213
        %1380 = vmatpush.bf16.msra.mxu0 %v1211
        %1381 = vmatpush.bf16.msra.mxu0 %v1209
        %1382 = vmatpush.bf16.msra.mxu0 %v1207
        %1383 = vmatpush.bf16.msra.mxu0 %v1205
        %1384 = vmatpush.bf16.msra.mxu0 %v1203
        %1385 = vmatpush.bf16.msra.mxu0 %v1201
        %1386 = vmatmul.bf16.gmra.mxu0 %v889
        %v1387 = vpop.f32.mrf.mxu0
        %v1388 = vadd.f32 %v1374, %v1387
        %v1389 = vpop.f32.mrf.mxu0
        %v1390 = vadd.f32 %v1376, %v1389
        %1391 = vdwg.mxu0
        %v1392 = vmax.f32 %v1332, 0.0
        %v1393 = vmax.f32 %v1388, 0.0
        %v1394 = vmax.f32 %v1334, 0.0
        %v1395 = vmax.f32 %v1390, 0.0
        %v1396 = vpack.c.bf16 %v1394, %v1392
        %v1397 = vpack.c.bf16 %v1395, %v1393
        %v1398 = vld [vmem:[#allocation10] sm:$0xf]
        %v1399 = vld [vmem:[#allocation10 + $0x4] sm:$0xf]
        %v1400 = vld [vmem:[#allocation10 + $0x8] sm:$0xf]
        %v1401 = vld [vmem:[#allocation10 + $0xc] sm:$0xf]
        %v1402 = vld [vmem:[#allocation10 + $0x10] sm:$0xf]
        %v1403 = vld [vmem:[#allocation10 + $0x14] sm:$0xf]
        %v1404 = vld [vmem:[#allocation10 + $0x18] sm:$0xf]
        %v1405 = vld [vmem:[#allocation10 + $0x1c] sm:$0xf]
        %v1406 = vld [vmem:[#allocation10 + $0x20] sm:$0xf]
        %v1407 = vld [vmem:[#allocation10 + $0x24] sm:$0xf]
        %v1408 = vld [vmem:[#allocation10 + $0x28] sm:$0xf]
        %v1409 = vld [vmem:[#allocation10 + $0x2c] sm:$0xf]
        %v1410 = vld [vmem:[#allocation10 + $0x30] sm:$0xf]
        %v1411 = vld [vmem:[#allocation10 + $0x34] sm:$0xf]
        %v1412 = vld [vmem:[#allocation10 + $0x38] sm:$0xf]
        %v1413 = vld [vmem:[#allocation10 + $0x3c] sm:$0xf]
        %v1414 = vld [vmem:[#allocation10 + $0x40] sm:$0xf]
        %v1415 = vld [vmem:[#allocation10 + $0x44] sm:$0xf]
        %v1416 = vld [vmem:[#allocation10 + $0x48] sm:$0xf]
        %v1417 = vld [vmem:[#allocation10 + $0x4c] sm:$0xf]
        %v1418 = vld [vmem:[#allocation10 + $0x50] sm:$0xf]
        %v1419 = vld [vmem:[#allocation10 + $0x54] sm:$0xf]
        %v1420 = vld [vmem:[#allocation10 + $0x58] sm:$0xf]
        %v1421 = vld [vmem:[#allocation10 + $0x5c] sm:$0xf]
        %v1422 = vld [vmem:[#allocation10 + $0x60] sm:$0xf]
        %v1423 = vld [vmem:[#allocation10 + $0x64] sm:$0xf]
        %v1424 = vld [vmem:[#allocation10 + $0x68] sm:$0xf]
        %v1425 = vld [vmem:[#allocation10 + $0x6c] sm:$0xf]
        %v1426 = vld [vmem:[#allocation10 + $0x70] sm:$0xf]
        %v1427 = vld [vmem:[#allocation10 + $0x74] sm:$0xf]
        %v1428 = vld [vmem:[#allocation10 + $0x78] sm:$0xf]
        %v1429 = vld [vmem:[#allocation10 + $0x7c] sm:$0xf]
        %v1430 = vld [vmem:[%s6] sm:$0x1]
        %v1432 = vperm.slane %v1430, 0
        %v1466 = vunpack.c.l.b16 %v1398
        %v1467 = vunpack.c.l.b16 %v1399
        %v1468 = vunpack.c.l.b16 %v1400
        %v1469 = vunpack.c.l.b16 %v1401
        %v1470 = vunpack.c.l.b16 %v1402
        %v1471 = vunpack.c.l.b16 %v1403
        %v1472 = vunpack.c.l.b16 %v1404
        %v1473 = vunpack.c.l.b16 %v1405
        %v1474 = vunpack.c.l.b16 %v1406
        %v1475 = vunpack.c.l.b16 %v1407
        %v1476 = vunpack.c.l.b16 %v1408
        %v1477 = vunpack.c.l.b16 %v1409
        %v1478 = vunpack.c.l.b16 %v1410
        %v1479 = vunpack.c.l.b16 %v1411
        %v1480 = vunpack.c.l.b16 %v1412
        %v1481 = vunpack.c.l.b16 %v1413
        %v1482 = vunpack.c.l.b16 %v1414
        %v1483 = vunpack.c.l.b16 %v1415
        %v1484 = vunpack.c.l.b16 %v1416
        %v1485 = vunpack.c.l.b16 %v1417
        %v1486 = vunpack.c.l.b16 %v1418
        %v1487 = vunpack.c.l.b16 %v1419
        %v1488 = vunpack.c.l.b16 %v1420
        %v1489 = vunpack.c.l.b16 %v1421
        %v1490 = vunpack.c.l.b16 %v1422
        %v1491 = vunpack.c.l.b16 %v1423
        %v1492 = vunpack.c.l.b16 %v1424
        %v1493 = vunpack.c.l.b16 %v1425
        %v1494 = vunpack.c.l.b16 %v1426
        %v1495 = vunpack.c.l.b16 %v1427
        %v1496 = vunpack.c.l.b16 %v1428
        %v1497 = vunpack.c.l.b16 %v1429
        %v1498 = vpack.c.b16 %v1467, %v1466
        %v1499 = vpack.c.b16 %v1469, %v1468
        %v1500 = vpack.c.b16 %v1471, %v1470
        %v1501 = vpack.c.b16 %v1473, %v1472
        %v1502 = vpack.c.b16 %v1475, %v1474
        %v1503 = vpack.c.b16 %v1477, %v1476
        %v1504 = vpack.c.b16 %v1479, %v1478
        %v1505 = vpack.c.b16 %v1481, %v1480
        %v1506 = vpack.c.b16 %v1483, %v1482
        %v1507 = vpack.c.b16 %v1485, %v1484
        %v1508 = vpack.c.b16 %v1487, %v1486
        %v1509 = vpack.c.b16 %v1489, %v1488
        %v1510 = vpack.c.b16 %v1491, %v1490
        %v1511 = vpack.c.b16 %v1493, %v1492
        %v1512 = vpack.c.b16 %v1495, %v1494
        %v1513 = vpack.c.b16 %v1497, %v1496
        %1530 = vmatpush.bf16.msra.mxu0 %v1505
        %1531 = vmatpush.bf16.msra.mxu0 %v1504
        %1532 = vmatpush.bf16.msra.mxu0 %v1503
        %1533 = vmatpush.bf16.msra.mxu0 %v1502
        %1534 = vmatpush.bf16.msra.mxu0 %v1501
        %1535 = vmatpush.bf16.msra.mxu0 %v1500
        %1536 = vmatpush.bf16.msra.mxu0 %v1499
        %1537 = vmatpush.bf16.msra.mxu0 %v1498
        %1538 = vmatmul.bf16.gmra.mxu0 %v1396
        %v1539 = vpop.f32.mrf.mxu0
        %v1540 = vadd.f32 %v1432, %v1539
        %v1541 = vpop.f32.mrf.mxu0
        %v1542 = vadd.f32 %v1432, %v1541
        %1543 = vdwg.mxu0
        %1544 = vmatpush.bf16.msra.mxu0 %v1513
        %1545 = vmatpush.bf16.msra.mxu0 %v1512
        %1546 = vmatpush.bf16.msra.mxu0 %v1511
        %1547 = vmatpush.bf16.msra.mxu0 %v1510
        %1548 = vmatpush.bf16.msra.mxu0 %v1509
        %1549 = vmatpush.bf16.msra.mxu0 %v1508
        %1550 = vmatpush.bf16.msra.mxu0 %v1507
        %1551 = vmatpush.bf16.msra.mxu0 %v1506
        %1552 = vmatmul.bf16.gmra.mxu0 %v1397
        %v1553 = vpop.f32.mrf.mxu0
        %v1554 = vadd.f32 %v1540, %v1553
        %v1555 = vpop.f32.mrf.mxu0
        %v1556 = vadd.f32 %v1542, %v1555
        %1557 = vdwg.mxu0
        %1558 = vst [vmem:[%s363] sm:$0xff] %v1554
        %1559 = vst [vmem:[%s363 + $0x8] sm:$0xff] %v1556
        %s1560 = sand.u32 %s186, 1
        %s1561 = scalar_lea.sflag [#allocation4], %s1560
        %s1562 = sand.u32 %s186, 1
        %s1563 = smul.addr %s1562, 16
        %s1564 = scalar_lea.vmem [#allocation11], %s1563
        // Predicated region
        $region69: #{tpu_custom_call.1} parent=47 // pred_check
          %p1565 = pneg %p196
        $region70: #{tpu_custom_call.1} parent=47 // pred_check_branch
          %1567 = sbr.rel (%p1565) target = $region72
        $region71: #{tpu_custom_call.1} parent=47 // pred_region
          %s1568 = smul.u32 2, %s26
          %1570 = vsyncadd %s1561, 0
          %s1571 = smul.addr %s1568, 8
          %s1572 = scalar_lea.hbm %s7, %s1571
          %s1573 = sshll.u32 %s1564, 4
          %s1574 = int_to_ptr.vmem [resolvable:$true] %s1573
          %s1575 = sshll.u32 %s1572, 4
          %s1576 = int_to_ptr.hbm [resolvable:$true] %s1575
          %1581 = dma.vmem_to_hbm [thread:$0]  %s1574, 256, %s1576, %s1561, 128, 128, 8
        $region72: #{tpu_custom_call.1} parent=47 // pred_fallthru
          _
      $region48: #{tpu_custom_call.1} parent=5 // pred_fallthru
        _
      %p1582 = scmp.le.s32.totalorder 2, %s21
      // Predicated region
      $region73: #{tpu_custom_call.1} parent=5 // pred_check
        %p1583 = pneg %p1582
      $region74: #{tpu_custom_call.1} parent=5 // pred_check_branch
        %1585 = sbr.rel (%p1583) target = $region76
      $region75: #{tpu_custom_call.1} parent=5 // pred_region
        %s1586 = ssub.s32 %s21, 2
        // Predicated region
        $region77: #{tpu_custom_call.1} parent=75 // pred_check
          %p1587 = pneg %p202
        $region78: #{tpu_custom_call.1} parent=75 // pred_check_branch
          %1589 = sbr.rel (%p1587) target = $region80
        $region79: #{tpu_custom_call.1} parent=75 // pred_region
          %s1590 = sand.u32 %s187, 1
          %s1591 = scalar_lea.sflag [#allocation4], %s1590
          %s1592 = sand.u32 %s187, 1
          %s1593 = smul.addr %s1592, 16
          %s1594 = scalar_lea.vmem [#allocation11], %s1593
          %1596 = dma.done %s1591, 256
        $region80: #{tpu_custom_call.1} parent=75 // pred_fallthru
          _
      $region76: #{tpu_custom_call.1} parent=5 // pred_fallthru
        _
    $region6: #{tpu_custom_call.1} parent=1 // loop_footer
      %s25 = sadd.s32 1, %s21
    $region7: #{tpu_custom_call.1} parent=1 // loop_footer_branch
      %20 = sbr.rel target = $region3
    $region8: #{tpu_custom_call.1} parent=1 // loop_exit
      _
    %1597 = vsyncpa [#allocation3], 1
    %s1598 = scalar_lea.sflag [#allocation3], 1
    %1599 = vsyncpa %s1598, 1
    %1600 = vsyncpa [#allocation6], 1
    %1601 = vsyncpa [#allocation9], 1
    %1602 = vsyncpa [#allocation4], 1
    %s1603 = scalar_lea.sflag [#allocation4], 1
    %1604 = vsyncpa %s1603, 1

</llo_original>
